<compile_context>
chip_gen: v5e
topology: v5e:2x2
jax: 0.10.0
libtpu: 0.0.40
codegen_flags: <defaults>
</compile_context>

<pallas_src>
import functools
import math

import jax
import jax.numpy as jnp
from jax import lax
from jax.experimental import pallas as pl
from jax.experimental.pallas import tpu as pltpu

EPS = 1e-5

# Same pooling configs as `cnvs` in the PyTorch __init__: (kernel, stride, padding)
CNVS = [(6, 6, 3), (4, 4, 0), (3, 3, 1), (3, 3, 1), (2, 2, 0)]


# ----------------------------------------------------------------------------
# Fused probe kernel: max-pool -> batchnorm (no affine) -> full-kernel conv
# Grid = (phase, batch-tile).  Phase 0: accumulate batch stats.  Phase 1: output.
# ----------------------------------------------------------------------------
def _probe_kernel(windows_ref, w_ref, b_ref, out_ref,
                  s1_ref, s2_ref, md_ref, sd_ref, *,
                  kk, num_ch, hpwp, inv_count, eps):
    ph = pl.program_id(0)        # 0 = accumulate per-column stats, 1 = emit output
    nt = pl.program_id(1)        # batch tile index

    # MaxPool2d: elementwise VPU max across the KK window slices (D on lanes, bf16).
    # Four independent chains for ILP without blowing up the live-vreg count.
    n_chains = min(4, kk)
    chains = [windows_ref[i] for i in range(n_chains)]
    for i in range(n_chains, kk):
        chains[i % n_chains] = jnp.maximum(chains[i % n_chains], windows_ref[i])
    pooled = chains[0]
    for c in range(1, n_chains):
        pooled = jnp.maximum(pooled, chains[c])
    pooled = pooled.astype(jnp.float32)                      # (TN, D); stats path in f32

    @pl.when(jnp.logical_and(ph == 0, nt == 0))
    def _():
        s1_ref[...] = jnp.zeros_like(s1_ref)
        s2_ref[...] = jnp.zeros_like(s2_ref)

    @pl.when(ph == 0)
    def _():
        # Per-column (per (channel, spatial) position) sums over the batch tile.
        # No MXU work in the stats pass: just sublane reductions + f32 accumulation.
        # TODO(synk): E[x^2]-E[x]^2 form (matches PyTorch biased BN batch stats);
        # a centered two-pass form would need a third grid phase.
        s1_ref[...] += jnp.sum(pooled, axis=0, keepdims=True)            # (1, D)
        s2_ref[...] += jnp.sum(pooled * pooled, axis=0, keepdims=True)   # (1, D)

    @pl.when(jnp.logical_and(ph == 1, nt == 0))
    def _():
        # Finalize BatchNorm batch statistics exactly once, cache the per-column
        # mean / inv-std in VMEM scratch for every phase-1 batch tile.
        d = s1_ref.shape[1]
        # One-hot channel membership sel[d, c] = (d // hpwp == c), built in-kernel
        # (iota + compare; no integer division) so no (D, C) input lives in VMEM.
        row = lax.broadcasted_iota(jnp.int32, (d, num_ch), 0)
        col = lax.broadcasted_iota(jnp.int32, (d, num_ch), 1)
        diff = row - col * hpwp
        sel = jnp.logical_and(diff >= 0, diff < hpwp).astype(jnp.float32)   # (D, C)

        sum1_c = jnp.dot(s1_ref[...], sel, preferred_element_type=jnp.float32)  # (1, C)
        sum2_c = jnp.dot(s2_ref[...], sel, preferred_element_type=jnp.float32)  # (1, C)
        mean_c = sum1_c * inv_count
        var_c = jnp.maximum(sum2_c * inv_count - mean_c * mean_c, 0.0)   # biased var
        scale_c = lax.rsqrt(var_c + eps)

        # Broadcast per-channel stats back to the flattened D axis via sel^T.
        selT = sel.T                                                     # (C, D)
        md_ref[...] = jnp.dot(mean_c, selT, preferred_element_type=jnp.float32)
        sd_ref[...] = jnp.dot(scale_c, selT, preferred_element_type=jnp.float32)

    @pl.when(ph == 1)
    def _():
        normed = ((pooled - md_ref[...]) * sd_ref[...]).astype(w_ref.dtype)  # (TN, D) bf16
        # Conv2d with kernel == full spatial extent  ==  (TN, D) @ (D, M_pad) + bias.
        out = jnp.dot(normed, w_ref[...], preferred_element_type=jnp.float32)
        out_ref[...] = out + b_ref[...]                                  # (TN, M_pad)


def _pick_batch_tile(n, kk, d):
    """Largest 8-multiple divisor of n whose windows tile fits a VMEM budget."""
    if n % 8 != 0:
        return n                              # tiny / ragged batch: one full-array tile
    budget = 4 * 1024 * 1024                  # bytes per windows buffer (x2 double-buffered)
    for t in (512, 256, 128, 64, 32, 16, 8):
        if n % t == 0 and kk * t * d * 2 <= budget:
            return t
    return 8


@functools.partial(jax.jit, static_argnames=("pool_cfg", "eps"))
def probe_forward_pallas(x, conv_w, conv_b, *, pool_cfg, eps=EPS):
    """One linear probe: MaxPool2d -> BatchNorm2d(affine=False) -> Conv2d -> squeeze."""
    k, s, p = pool_cfg
    N, C, H, W = x.shape
    M = conv_w.shape[0]
    Hp = (H + 2 * p - k) // s + 1
    Wp = (W + 2 * p - k) // s + 1
    D, KK = C * Hp * Wp, k * k
    M_pad = ((M + 127) // 128) * 128                          # lane-dense output

    # Glue: pooling windows, window-major stack so D is the contiguous lane axis.
    # (padding value -inf == PyTorch max-pool padding semantics)
    # TODO(synk): could skip materializing this by DMA-ing x (memory_space=pl.ANY)
    # and doing strided loads in-kernel.
    xp = jnp.pad(x, ((0, 0), (0, 0), (p, p), (p, p)), constant_values=-jnp.inf)
    wins = []
    for di in range(k):
        for dj in range(k):
            wins.append(lax.slice(xp, (0, 0, di, dj),
                                  (N, C, di + (Hp - 1) * s + 1, dj + (Wp - 1) * s + 1),
                                  (1, 1, s, s)))
    windows = jnp.stack(wins, axis=0).reshape(KK, N, D).astype(jnp.bfloat16)

    # Glue: flatten conv weights to (D, M) in bf16, pad classes to 128 lanes; bias too.
    # TODO(synk): for very large D (D*M_pad beyond VMEM) the class matmul would need a
    # K-tiled grid axis; not needed at these probe sizes.
    w = conv_w.reshape(M, D).T.astype(jnp.bfloat16)
    w = jnp.pad(w, ((0, 0), (0, M_pad - M)))
    b = jnp.pad(conv_b.reshape(1, M).astype(jnp.float32), ((0, 0), (0, M_pad - M)))

    TN = _pick_batch_tile(N, KK, D)
    NT = N // TN
    inv_count = 1.0 / float(N * Hp * Wp)

    kernel = functools.partial(_probe_kernel, kk=KK, num_ch=C, hpwp=Hp * Wp,
                               inv_count=inv_count, eps=eps)

    # Output index map: stays on block 0 during the stats phase (no wasted writebacks),
    # then walks the batch tiles in phase 1.
    out = pl.pallas_call(
        kernel,
        out_shape=jax.ShapeDtypeStruct((N, M_pad), jnp.float32),
        grid_spec=pltpu.PrefetchScalarGridSpec(
            num_scalar_prefetch=0,
            grid=(2, NT),
            in_specs=[
                pl.BlockSpec((KK, TN, D), lambda ph, n: (0, n, 0)),
                pl.BlockSpec((D, M_pad), lambda ph, n: (0, 0)),
                pl.BlockSpec((1, M_pad), lambda ph, n: (0, 0)),
            ],
            out_specs=pl.BlockSpec((TN, M_pad), lambda ph, n: (ph * n, 0)),
            scratch_shapes=[pltpu.VMEM((1, D), jnp.float32)] * 4,
        ),
        # TODO(synk): batch-stat accumulation couples the batch tiles, so both axes are
        # "arbitrary"; splitting stats into a separate call would let phase-1 N-tiles be
        # "parallel" across v7x's two TensorCores.
        compiler_params=pltpu.CompilerParams(
            dimension_semantics=("arbitrary", "arbitrary")),
    )(windows, w, b)
    return out[:, :M]


# ----------------------------------------------------------------------------
# Pure-JAX reference of the same probe (for a correctness sanity check).
# ----------------------------------------------------------------------------
def probe_forward_reference(x, conv_w, conv_b, *, pool_cfg, eps=EPS):
    k, s, p = pool_cfg
    y = lax.reduce_window(x, -jnp.inf, lax.max, (1, 1, k, k), (1, 1, s, s),
                          ((0, 0), (0, 0), (p, p), (p, p)))
    mean = jnp.mean(y, axis=(0, 2, 3), keepdims=True)
    var = jnp.mean((y - mean) ** 2, axis=(0, 2, 3), keepdims=True)
    yn = (y - mean) / jnp.sqrt(var + eps)
    N = x.shape[0]
    M = conv_w.shape[0]
    return yn.reshape(N, -1) @ conv_w.reshape(M, -1).T + conv_b[None, :]


# ----------------------------------------------------------------------------
# Synthetic trunk layers (plain-JAX glue; the trunk is external to Probes).
# ----------------------------------------------------------------------------
def _conv_relu(w, b):
    def fn(x):
        y = lax.conv_general_dilated(x, w, (1, 1), [(1, 1), (1, 1)],
                                     dimension_numbers=("NCHW", "OIHW", "NCHW"))
        return jax.nn.relu(y + b[None, :, None, None])
    return fn


def _maxpool(k, s, p):
    def fn(x):
        return lax.reduce_window(x, -jnp.inf, lax.max, (1, 1, k, k), (1, 1, s, s),
                                 ((0, 0), (0, 0), (p, p), (p, p)))
    return fn


# ----------------------------------------------------------------------------
# Probes container mirroring the PyTorch module's __init__ / forward logic.
# ----------------------------------------------------------------------------
class ProbesPallas:
    def __init__(self, trunk_layers, probed_layers, num_classes, key,
                 example_input_shape):
        self.trunk_layers = trunk_layers           # list of (name, fn)
        self.probed_layers = probed_layers
        self.num_classes = num_classes
        self.probes = []                           # [{"pool": (k,s,p), "w": ..., "b": ...}]
        self.deepest_layer_index = 0

        x = jnp.zeros(example_input_shape, jnp.float32)   # shape-discovery pass
        j = 0
        for index, (name, fn) in enumerate(self.trunk_layers):
            x = fn(x)
            if index > max(self.probed_layers):
                break
            if index in self.probed_layers or name in self.probed_layers:
                self.deepest_layer_index = index
                k_, s_, p_ = CNVS[j]
                j += 1
                N, C, H, W = x.shape
                Hp = (H + 2 * p_ - k_) // s_ + 1
                Wp = (W + 2 * p_ - k_) // s_ + 1
                # Conv2d(C, num_classes, (Hp, Wp), bias=True); xavier_uniform, bias=0.
                fan_in = C * Hp * Wp
                fan_out = num_classes * Hp * Wp
                bound = math.sqrt(6.0 / (fan_in + fan_out))
                key, wk = jax.random.split(key)
                conv_w = jax.random.uniform(wk, (num_classes, C, Hp, Wp),
                                            jnp.float32, -bound, bound)
                conv_b = jnp.zeros((num_classes,), jnp.float32)
                self.probes.append({"pool": (k_, s_, p_), "w": conv_w, "b": conv_b})
                # TODO(synk): BatchNorm running-stat (eval-mode) bookkeeping is not
                # modeled; training-mode batch statistics are used (fresh module).

    def _forward(self, x, probe_fn):
        outputs = []
        for index, (name, fn) in enumerate(self.trunk_layers):
            x = fn(x)
            probe_index = None
            if index in self.probed_layers:
                probe_index = self.probed_layers.index(index)
            elif name in self.probed_layers:
                probe_index = self.probed_layers.index(name)
            if probe_index is not None:
                p = self.probes[probe_index]
                outputs.append(probe_fn(x, p["w"], p["b"], pool_cfg=p["pool"], eps=EPS))
            if index == self.deepest_layer_index:
                break
        return outputs

    def forward(self, x):
        return self._forward(x, probe_forward_pallas)

    def forward_reference(self, x):
        return self._forward(x, probe_forward_reference)


if __name__ == "__main__":
    key = jax.random.PRNGKey(0)
    k1, k2, k3, k4, kx, kp = jax.random.split(key, 6)

    # Tiny synthetic trunk: conv(3->4)+relu, maxpool(2), conv(4->8)+relu.
    w1 = jax.random.normal(k1, (4, 3, 3, 3), jnp.float32) * 0.1
    b1 = jax.random.normal(k2, (4,), jnp.float32) * 0.1
    w2 = jax.random.normal(k3, (8, 4, 3, 3), jnp.float32) * 0.1
    b2 = jax.random.normal(k4, (8,), jnp.float32) * 0.1
    trunk = [("conv1", _conv_relu(w1, b1)),
             ("pool1", _maxpool(2, 2, 0)),
             ("conv2", _conv_relu(w2, b2))]

    num_classes = 16
    model = ProbesPallas(trunk, probed_layers=[1, 2], num_classes=num_classes,
                         key=kp, example_input_shape=(2, 3, 16, 16))

    x = jax.random.normal(kx, (2, 3, 16, 16), jnp.float32)

    outs = model.forward(x)
    outs = [jax.block_until_ready(o) for o in outs]

    refs = model.forward_reference(x)
    assert len(outs) == len(refs) == 2
    for o, r in zip(outs, refs):
        assert o.shape == r.shape == (2, num_classes)
        if not bool(jnp.allclose(o, r, rtol=5e-2, atol=5e-2)):
            raise AssertionError("Pallas probe output mismatch vs reference")

    print("KERNEL_OK")
</pallas_src>

<mosaic_0001>
module attributes {stable_mosaic.version = 11 : i64} {
  func.func @_probe_kernel(%arg0: i32, %arg1: i32, %arg2: memref<36x2x16xbf16, #tpu.memory_space<vmem>>, %arg3: memref<16x128xbf16, #tpu.memory_space<vmem>>, %arg4: memref<1x128xf32, #tpu.memory_space<vmem>>, %arg5: memref<2x128xf32, #tpu.memory_space<vmem>>, %arg6: memref<1x16xf32, #tpu.memory_space<vmem>>, %arg7: memref<1x16xf32, #tpu.memory_space<vmem>>, %arg8: memref<1x16xf32, #tpu.memory_space<vmem>>, %arg9: memref<1x16xf32, #tpu.memory_space<vmem>>) attributes {dimension_semantics = [#tpu.dimension_semantics<arbitrary>, #tpu.dimension_semantics<arbitrary>], iteration_bounds = array<i64: 2, 1>, scalar_prefetch = 0 : i64, scratch_operands = 4 : i64, tpu.core_type = #tpu.core_type<tc>, window_params = [{transform_indices = @transform_0, window_bounds = array<i64: 36, 2, 16>}, {pipeline_mode = #tpu.pipeline_mode<synchronous>, transform_indices = @transform_1, window_bounds = array<i64: 16, 128>}, {pipeline_mode = #tpu.pipeline_mode<synchronous>, transform_indices = @transform_2, window_bounds = array<i64: 1, 128>}, {transform_indices = @transform_3, window_bounds = array<i64: 2, 128>}]} {
    %c0 = arith.constant 0 : index
    %c0_0 = arith.constant 0 : index
    %c0_1 = arith.constant 0 : index
    %0 = vector.load %arg2[%c0, %c0_0, %c0_1] : memref<36x2x16xbf16, #tpu.memory_space<vmem>>, vector<1x2x16xbf16>
    %1 = vector.shape_cast %0 : vector<1x2x16xbf16> to vector<2x16xbf16>
    %c1 = arith.constant 1 : index
    %c0_2 = arith.constant 0 : index
    %c0_3 = arith.constant 0 : index
    %2 = vector.load %arg2[%c1, %c0_2, %c0_3] : memref<36x2x16xbf16, #tpu.memory_space<vmem>>, vector<1x2x16xbf16>
    %3 = vector.shape_cast %2 : vector<1x2x16xbf16> to vector<2x16xbf16>
    %c2 = arith.constant 2 : index
    %c0_4 = arith.constant 0 : index
    %c0_5 = arith.constant 0 : index
    %4 = vector.load %arg2[%c2, %c0_4, %c0_5] : memref<36x2x16xbf16, #tpu.memory_space<vmem>>, vector<1x2x16xbf16>
    %5 = vector.shape_cast %4 : vector<1x2x16xbf16> to vector<2x16xbf16>
    %c3 = arith.constant 3 : index
    %c0_6 = arith.constant 0 : index
    %c0_7 = arith.constant 0 : index
    %6 = vector.load %arg2[%c3, %c0_6, %c0_7] : memref<36x2x16xbf16, #tpu.memory_space<vmem>>, vector<1x2x16xbf16>
    %7 = vector.shape_cast %6 : vector<1x2x16xbf16> to vector<2x16xbf16>
    %c4 = arith.constant 4 : index
    %c0_8 = arith.constant 0 : index
    %c0_9 = arith.constant 0 : index
    %8 = vector.load %arg2[%c4, %c0_8, %c0_9] : memref<36x2x16xbf16, #tpu.memory_space<vmem>>, vector<1x2x16xbf16>
    %9 = vector.shape_cast %8 : vector<1x2x16xbf16> to vector<2x16xbf16>
    %10 = arith.maximumf %1, %9 : vector<2x16xbf16>
    %c5 = arith.constant 5 : index
    %c0_10 = arith.constant 0 : index
    %c0_11 = arith.constant 0 : index
    %11 = vector.load %arg2[%c5, %c0_10, %c0_11] : memref<36x2x16xbf16, #tpu.memory_space<vmem>>, vector<1x2x16xbf16>
    %12 = vector.shape_cast %11 : vector<1x2x16xbf16> to vector<2x16xbf16>
    %13 = arith.maximumf %3, %12 : vector<2x16xbf16>
    %c6 = arith.constant 6 : index
    %c0_12 = arith.constant 0 : index
    %c0_13 = arith.constant 0 : index
    %14 = vector.load %arg2[%c6, %c0_12, %c0_13] : memref<36x2x16xbf16, #tpu.memory_space<vmem>>, vector<1x2x16xbf16>
    %15 = vector.shape_cast %14 : vector<1x2x16xbf16> to vector<2x16xbf16>
    %16 = arith.maximumf %5, %15 : vector<2x16xbf16>
    %c7 = arith.constant 7 : index
    %c0_14 = arith.constant 0 : index
    %c0_15 = arith.constant 0 : index
    %17 = vector.load %arg2[%c7, %c0_14, %c0_15] : memref<36x2x16xbf16, #tpu.memory_space<vmem>>, vector<1x2x16xbf16>
    %18 = vector.shape_cast %17 : vector<1x2x16xbf16> to vector<2x16xbf16>
    %19 = arith.maximumf %7, %18 : vector<2x16xbf16>
    %c8 = arith.constant 8 : index
    %c0_16 = arith.constant 0 : index
    %c0_17 = arith.constant 0 : index
    %20 = vector.load %arg2[%c8, %c0_16, %c0_17] : memref<36x2x16xbf16, #tpu.memory_space<vmem>>, vector<1x2x16xbf16>
    %21 = vector.shape_cast %20 : vector<1x2x16xbf16> to vector<2x16xbf16>
    %22 = arith.maximumf %10, %21 : vector<2x16xbf16>
    %c9 = arith.constant 9 : index
    %c0_18 = arith.constant 0 : index
    %c0_19 = arith.constant 0 : index
    %23 = vector.load %arg2[%c9, %c0_18, %c0_19] : memref<36x2x16xbf16, #tpu.memory_space<vmem>>, vector<1x2x16xbf16>
    %24 = vector.shape_cast %23 : vector<1x2x16xbf16> to vector<2x16xbf16>
    %25 = arith.maximumf %13, %24 : vector<2x16xbf16>
    %c10 = arith.constant 10 : index
    %c0_20 = arith.constant 0 : index
    %c0_21 = arith.constant 0 : index
    %26 = vector.load %arg2[%c10, %c0_20, %c0_21] : memref<36x2x16xbf16, #tpu.memory_space<vmem>>, vector<1x2x16xbf16>
    %27 = vector.shape_cast %26 : vector<1x2x16xbf16> to vector<2x16xbf16>
    %28 = arith.maximumf %16, %27 : vector<2x16xbf16>
    %c11 = arith.constant 11 : index
    %c0_22 = arith.constant 0 : index
    %c0_23 = arith.constant 0 : index
    %29 = vector.load %arg2[%c11, %c0_22, %c0_23] : memref<36x2x16xbf16, #tpu.memory_space<vmem>>, vector<1x2x16xbf16>
    %30 = vector.shape_cast %29 : vector<1x2x16xbf16> to vector<2x16xbf16>
    %31 = arith.maximumf %19, %30 : vector<2x16xbf16>
    %c12 = arith.constant 12 : index
    %c0_24 = arith.constant 0 : index
    %c0_25 = arith.constant 0 : index
    %32 = vector.load %arg2[%c12, %c0_24, %c0_25] : memref<36x2x16xbf16, #tpu.memory_space<vmem>>, vector<1x2x16xbf16>
    %33 = vector.shape_cast %32 : vector<1x2x16xbf16> to vector<2x16xbf16>
    %34 = arith.maximumf %22, %33 : vector<2x16xbf16>
    %c13 = arith.constant 13 : index
    %c0_26 = arith.constant 0 : index
    %c0_27 = arith.constant 0 : index
    %35 = vector.load %arg2[%c13, %c0_26, %c0_27] : memref<36x2x16xbf16, #tpu.memory_space<vmem>>, vector<1x2x16xbf16>
    %36 = vector.shape_cast %35 : vector<1x2x16xbf16> to vector<2x16xbf16>
    %37 = arith.maximumf %25, %36 : vector<2x16xbf16>
    %c14 = arith.constant 14 : index
    %c0_28 = arith.constant 0 : index
    %c0_29 = arith.constant 0 : index
    %38 = vector.load %arg2[%c14, %c0_28, %c0_29] : memref<36x2x16xbf16, #tpu.memory_space<vmem>>, vector<1x2x16xbf16>
    %39 = vector.shape_cast %38 : vector<1x2x16xbf16> to vector<2x16xbf16>
    %40 = arith.maximumf %28, %39 : vector<2x16xbf16>
    %c15 = arith.constant 15 : index
    %c0_30 = arith.constant 0 : index
    %c0_31 = arith.constant 0 : index
    %41 = vector.load %arg2[%c15, %c0_30, %c0_31] : memref<36x2x16xbf16, #tpu.memory_space<vmem>>, vector<1x2x16xbf16>
    %42 = vector.shape_cast %41 : vector<1x2x16xbf16> to vector<2x16xbf16>
    %43 = arith.maximumf %31, %42 : vector<2x16xbf16>
    %c16 = arith.constant 16 : index
    %c0_32 = arith.constant 0 : index
    %c0_33 = arith.constant 0 : index
    %44 = vector.load %arg2[%c16, %c0_32, %c0_33] : memref<36x2x16xbf16, #tpu.memory_space<vmem>>, vector<1x2x16xbf16>
    %45 = vector.shape_cast %44 : vector<1x2x16xbf16> to vector<2x16xbf16>
    %46 = arith.maximumf %34, %45 : vector<2x16xbf16>
    %c17 = arith.constant 17 : index
    %c0_34 = arith.constant 0 : index
    %c0_35 = arith.constant 0 : index
    %47 = vector.load %arg2[%c17, %c0_34, %c0_35] : memref<36x2x16xbf16, #tpu.memory_space<vmem>>, vector<1x2x16xbf16>
    %48 = vector.shape_cast %47 : vector<1x2x16xbf16> to vector<2x16xbf16>
    %49 = arith.maximumf %37, %48 : vector<2x16xbf16>
    %c18 = arith.constant 18 : index
    %c0_36 = arith.constant 0 : index
    %c0_37 = arith.constant 0 : index
    %50 = vector.load %arg2[%c18, %c0_36, %c0_37] : memref<36x2x16xbf16, #tpu.memory_space<vmem>>, vector<1x2x16xbf16>
    %51 = vector.shape_cast %50 : vector<1x2x16xbf16> to vector<2x16xbf16>
    %52 = arith.maximumf %40, %51 : vector<2x16xbf16>
    %c19 = arith.constant 19 : index
    %c0_38 = arith.constant 0 : index
    %c0_39 = arith.constant 0 : index
    %53 = vector.load %arg2[%c19, %c0_38, %c0_39] : memref<36x2x16xbf16, #tpu.memory_space<vmem>>, vector<1x2x16xbf16>
    %54 = vector.shape_cast %53 : vector<1x2x16xbf16> to vector<2x16xbf16>
    %55 = arith.maximumf %43, %54 : vector<2x16xbf16>
    %c20 = arith.constant 20 : index
    %c0_40 = arith.constant 0 : index
    %c0_41 = arith.constant 0 : index
    %56 = vector.load %arg2[%c20, %c0_40, %c0_41] : memref<36x2x16xbf16, #tpu.memory_space<vmem>>, vector<1x2x16xbf16>
    %57 = vector.shape_cast %56 : vector<1x2x16xbf16> to vector<2x16xbf16>
    %58 = arith.maximumf %46, %57 : vector<2x16xbf16>
    %c21 = arith.constant 21 : index
    %c0_42 = arith.constant 0 : index
    %c0_43 = arith.constant 0 : index
    %59 = vector.load %arg2[%c21, %c0_42, %c0_43] : memref<36x2x16xbf16, #tpu.memory_space<vmem>>, vector<1x2x16xbf16>
    %60 = vector.shape_cast %59 : vector<1x2x16xbf16> to vector<2x16xbf16>
    %61 = arith.maximumf %49, %60 : vector<2x16xbf16>
    %c22 = arith.constant 22 : index
    %c0_44 = arith.constant 0 : index
    %c0_45 = arith.constant 0 : index
    %62 = vector.load %arg2[%c22, %c0_44, %c0_45] : memref<36x2x16xbf16, #tpu.memory_space<vmem>>, vector<1x2x16xbf16>
    %63 = vector.shape_cast %62 : vector<1x2x16xbf16> to vector<2x16xbf16>
    %64 = arith.maximumf %52, %63 : vector<2x16xbf16>
    %c23 = arith.constant 23 : index
    %c0_46 = arith.constant 0 : index
    %c0_47 = arith.constant 0 : index
    %65 = vector.load %arg2[%c23, %c0_46, %c0_47] : memref<36x2x16xbf16, #tpu.memory_space<vmem>>, vector<1x2x16xbf16>
    %66 = vector.shape_cast %65 : vector<1x2x16xbf16> to vector<2x16xbf16>
    %67 = arith.maximumf %55, %66 : vector<2x16xbf16>
    %c24 = arith.constant 24 : index
    %c0_48 = arith.constant 0 : index
    %c0_49 = arith.constant 0 : index
    %68 = vector.load %arg2[%c24, %c0_48, %c0_49] : memref<36x2x16xbf16, #tpu.memory_space<vmem>>, vector<1x2x16xbf16>
    %69 = vector.shape_cast %68 : vector<1x2x16xbf16> to vector<2x16xbf16>
    %70 = arith.maximumf %58, %69 : vector<2x16xbf16>
    %c25 = arith.constant 25 : index
    %c0_50 = arith.constant 0 : index
    %c0_51 = arith.constant 0 : index
    %71 = vector.load %arg2[%c25, %c0_50, %c0_51] : memref<36x2x16xbf16, #tpu.memory_space<vmem>>, vector<1x2x16xbf16>
    %72 = vector.shape_cast %71 : vector<1x2x16xbf16> to vector<2x16xbf16>
    %73 = arith.maximumf %61, %72 : vector<2x16xbf16>
    %c26 = arith.constant 26 : index
    %c0_52 = arith.constant 0 : index
    %c0_53 = arith.constant 0 : index
    %74 = vector.load %arg2[%c26, %c0_52, %c0_53] : memref<36x2x16xbf16, #tpu.memory_space<vmem>>, vector<1x2x16xbf16>
    %75 = vector.shape_cast %74 : vector<1x2x16xbf16> to vector<2x16xbf16>
    %76 = arith.maximumf %64, %75 : vector<2x16xbf16>
    %c27 = arith.constant 27 : index
    %c0_54 = arith.constant 0 : index
    %c0_55 = arith.constant 0 : index
    %77 = vector.load %arg2[%c27, %c0_54, %c0_55] : memref<36x2x16xbf16, #tpu.memory_space<vmem>>, vector<1x2x16xbf16>
    %78 = vector.shape_cast %77 : vector<1x2x16xbf16> to vector<2x16xbf16>
    %79 = arith.maximumf %67, %78 : vector<2x16xbf16>
    %c28 = arith.constant 28 : index
    %c0_56 = arith.constant 0 : index
    %c0_57 = arith.constant 0 : index
    %80 = vector.load %arg2[%c28, %c0_56, %c0_57] : memref<36x2x16xbf16, #tpu.memory_space<vmem>>, vector<1x2x16xbf16>
    %81 = vector.shape_cast %80 : vector<1x2x16xbf16> to vector<2x16xbf16>
    %82 = arith.maximumf %70, %81 : vector<2x16xbf16>
    %c29 = arith.constant 29 : index
    %c0_58 = arith.constant 0 : index
    %c0_59 = arith.constant 0 : index
    %83 = vector.load %arg2[%c29, %c0_58, %c0_59] : memref<36x2x16xbf16, #tpu.memory_space<vmem>>, vector<1x2x16xbf16>
    %84 = vector.shape_cast %83 : vector<1x2x16xbf16> to vector<2x16xbf16>
    %85 = arith.maximumf %73, %84 : vector<2x16xbf16>
    %c30 = arith.constant 30 : index
    %c0_60 = arith.constant 0 : index
    %c0_61 = arith.constant 0 : index
    %86 = vector.load %arg2[%c30, %c0_60, %c0_61] : memref<36x2x16xbf16, #tpu.memory_space<vmem>>, vector<1x2x16xbf16>
    %87 = vector.shape_cast %86 : vector<1x2x16xbf16> to vector<2x16xbf16>
    %88 = arith.maximumf %76, %87 : vector<2x16xbf16>
    %c31 = arith.constant 31 : index
    %c0_62 = arith.constant 0 : index
    %c0_63 = arith.constant 0 : index
    %89 = vector.load %arg2[%c31, %c0_62, %c0_63] : memref<36x2x16xbf16, #tpu.memory_space<vmem>>, vector<1x2x16xbf16>
    %90 = vector.shape_cast %89 : vector<1x2x16xbf16> to vector<2x16xbf16>
    %91 = arith.maximumf %79, %90 : vector<2x16xbf16>
    %c32 = arith.constant 32 : index
    %c0_64 = arith.constant 0 : index
    %c0_65 = arith.constant 0 : index
    %92 = vector.load %arg2[%c32, %c0_64, %c0_65] : memref<36x2x16xbf16, #tpu.memory_space<vmem>>, vector<1x2x16xbf16>
    %93 = vector.shape_cast %92 : vector<1x2x16xbf16> to vector<2x16xbf16>
    %94 = arith.maximumf %82, %93 : vector<2x16xbf16>
    %c33 = arith.constant 33 : index
    %c0_66 = arith.constant 0 : index
    %c0_67 = arith.constant 0 : index
    %95 = vector.load %arg2[%c33, %c0_66, %c0_67] : memref<36x2x16xbf16, #tpu.memory_space<vmem>>, vector<1x2x16xbf16>
    %96 = vector.shape_cast %95 : vector<1x2x16xbf16> to vector<2x16xbf16>
    %97 = arith.maximumf %85, %96 : vector<2x16xbf16>
    %c34 = arith.constant 34 : index
    %c0_68 = arith.constant 0 : index
    %c0_69 = arith.constant 0 : index
    %98 = vector.load %arg2[%c34, %c0_68, %c0_69] : memref<36x2x16xbf16, #tpu.memory_space<vmem>>, vector<1x2x16xbf16>
    %99 = vector.shape_cast %98 : vector<1x2x16xbf16> to vector<2x16xbf16>
    %100 = arith.maximumf %88, %99 : vector<2x16xbf16>
    %c35 = arith.constant 35 : index
    %c0_70 = arith.constant 0 : index
    %c0_71 = arith.constant 0 : index
    %101 = vector.load %arg2[%c35, %c0_70, %c0_71] : memref<36x2x16xbf16, #tpu.memory_space<vmem>>, vector<1x2x16xbf16>
    %102 = vector.shape_cast %101 : vector<1x2x16xbf16> to vector<2x16xbf16>
    %103 = arith.maximumf %91, %102 : vector<2x16xbf16>
    %104 = arith.maximumf %94, %97 : vector<2x16xbf16>
    %105 = arith.maximumf %104, %100 : vector<2x16xbf16>
    %106 = arith.maximumf %105, %103 : vector<2x16xbf16>
    %107 = arith.extf %106 : vector<2x16xbf16> to vector<2x16xf32>
    %c0_i32 = arith.constant 0 : i32
    %108 = arith.cmpi eq, %arg0, %c0_i32 : i32
    %c0_i32_72 = arith.constant 0 : i32
    %109 = arith.cmpi eq, %arg1, %c0_i32_72 : i32
    %110 = arith.andi %108, %109 : i1
    %111 = arith.extui %110 : i1 to i32
    %c0_i32_73 = arith.constant 0 : i32
    %112 = arith.cmpi ne, %111, %c0_i32_73 : i32
    scf.if %112 {
      %cst = arith.constant 0.000000e+00 : f32
      %124 = vector.broadcast %cst : f32 to vector<1x16xf32>
      %c0_80 = arith.constant 0 : index
      %c0_81 = arith.constant 0 : index
      %125 = vector.load %arg6[%c0_80, %c0_81] : memref<1x16xf32, #tpu.memory_space<vmem>>, vector<1x16xf32>
      tpu.vector_store %arg6[%c0_80, %c0_81], %124 {strides = array<i32>} : memref<1x16xf32, #tpu.memory_space<vmem>>, vector<1x16xf32>,
      %cst_82 = arith.constant 0.000000e+00 : f32
      %126 = vector.broadcast %cst_82 : f32 to vector<1x16xf32>
      %c0_83 = arith.constant 0 : index
      %c0_84 = arith.constant 0 : index
      %127 = vector.load %arg7[%c0_83, %c0_84] : memref<1x16xf32, #tpu.memory_space<vmem>>, vector<1x16xf32>
      tpu.vector_store %arg7[%c0_83, %c0_84], %126 {strides = array<i32>} : memref<1x16xf32, #tpu.memory_space<vmem>>, vector<1x16xf32>,
    } else {
    }
    %c0_i32_74 = arith.constant 0 : i32
    %113 = arith.cmpi eq, %arg0, %c0_i32_74 : i32
    %114 = arith.extui %113 : i1 to i32
    %c0_i32_75 = arith.constant 0 : i32
    %115 = arith.cmpi ne, %114, %c0_i32_75 : i32
    scf.if %115 {
      %c0_80 = arith.constant 0 : index
      %c0_81 = arith.constant 0 : index
      %124 = vector.load %arg6[%c0_80, %c0_81] : memref<1x16xf32, #tpu.memory_space<vmem>>, vector<1x16xf32>
      %cst = arith.constant dense<0.000000e+00> : vector<16xf32>
      %125 = vector.multi_reduction <add>, %107, %cst [0] : vector<2x16xf32> to vector<16xf32>
      %126 = vector.shape_cast %125 : vector<16xf32> to vector<1x16xf32>
      %127 = arith.addf %124, %126 : vector<1x16xf32>
      %c0_82 = arith.constant 0 : index
      %c0_83 = arith.constant 0 : index
      %128 = vector.load %arg6[%c0_82, %c0_83] : memref<1x16xf32, #tpu.memory_space<vmem>>, vector<1x16xf32>
      tpu.vector_store %arg6[%c0_82, %c0_83], %127 {strides = array<i32>} : memref<1x16xf32, #tpu.memory_space<vmem>>, vector<1x16xf32>,
      %c0_84 = arith.constant 0 : index
      %c0_85 = arith.constant 0 : index
      %129 = vector.load %arg7[%c0_84, %c0_85] : memref<1x16xf32, #tpu.memory_space<vmem>>, vector<1x16xf32>
      %130 = arith.mulf %107, %107 : vector<2x16xf32>
      %cst_86 = arith.constant dense<0.000000e+00> : vector<16xf32>
      %131 = vector.multi_reduction <add>, %130, %cst_86 [0] : vector<2x16xf32> to vector<16xf32>
      %132 = vector.shape_cast %131 : vector<16xf32> to vector<1x16xf32>
      %133 = arith.addf %129, %132 : vector<1x16xf32>
      %c0_87 = arith.constant 0 : index
      %c0_88 = arith.constant 0 : index
      %134 = vector.load %arg7[%c0_87, %c0_88] : memref<1x16xf32, #tpu.memory_space<vmem>>, vector<1x16xf32>
      tpu.vector_store %arg7[%c0_87, %c0_88], %133 {strides = array<i32>} : memref<1x16xf32, #tpu.memory_space<vmem>>, vector<1x16xf32>,
    } else {
    }
    %c1_i32 = arith.constant 1 : i32
    %116 = arith.cmpi eq, %arg0, %c1_i32 : i32
    %c0_i32_76 = arith.constant 0 : i32
    %117 = arith.cmpi eq, %arg1, %c0_i32_76 : i32
    %118 = arith.andi %116, %117 : i1
    %119 = arith.extui %118 : i1 to i32
    %c0_i32_77 = arith.constant 0 : i32
    %120 = arith.cmpi ne, %119, %c0_i32_77 : i32
    scf.if %120 {
      %124 = tpu.iota {dimensions = array<i32: 0>} : vector<16x4xi32>
      %125 = tpu.iota {dimensions = array<i32: 1>} : vector<16x4xi32>
      %c4_i32 = arith.constant 4 : i32
      %126 = vector.broadcast %c4_i32 : i32 to vector<16x4xi32>
      %127 = arith.muli %125, %126 : vector<16x4xi32>
      %128 = arith.subi %124, %127 : vector<16x4xi32>
      %c0_i32_80 = arith.constant 0 : i32
      %129 = vector.broadcast %c0_i32_80 : i32 to vector<16x4xi32>
      %130 = arith.cmpi sge, %128, %129 : vector<16x4xi32>
      %c4_i32_81 = arith.constant 4 : i32
      %131 = vector.broadcast %c4_i32_81 : i32 to vector<16x4xi32>
      %132 = arith.cmpi slt, %128, %131 : vector<16x4xi32>
      %133 = arith.andi %130, %132 : vector<16x4xi1>
      %134 = arith.extui %133 : vector<16x4xi1> to vector<16x4xi32>
      %135 = arith.sitofp %134 : vector<16x4xi32> to vector<16x4xf32>
      %c0_82 = arith.constant 0 : index
      %c0_83 = arith.constant 0 : index
      %136 = vector.load %arg6[%c0_82, %c0_83] : memref<1x16xf32, #tpu.memory_space<vmem>>, vector<1x16xf32>
      %cst = arith.constant dense<0.000000e+00> : vector<1x4xf32>
      %137 = tpu.matmul %136, %135, %cst {dimension_numbers = #tpu.dot_dimension_numbers<[1], [0], [0], [1], [0, 0, 1, 1], [], []>} : vector<1x16xf32>, vector<16x4xf32>, vector<1x4xf32> -> vector<1x4xf32>
      %c0_84 = arith.constant 0 : index
      %c0_85 = arith.constant 0 : index
      %138 = vector.load %arg7[%c0_84, %c0_85] : memref<1x16xf32, #tpu.memory_space<vmem>>, vector<1x16xf32>
      %cst_86 = arith.constant dense<0.000000e+00> : vector<1x4xf32>
      %139 = tpu.matmul %138, %135, %cst_86 {dimension_numbers = #tpu.dot_dimension_numbers<[1], [0], [0], [1], [0, 0, 1, 1], [], []>} : vector<1x16xf32>, vector<16x4xf32>, vector<1x4xf32> -> vector<1x4xf32>
      %cst_87 = arith.constant 1.250000e-01 : f32
      %140 = vector.broadcast %cst_87 : f32 to vector<1x4xf32>
      %141 = arith.mulf %137, %140 : vector<1x4xf32>
      %cst_88 = arith.constant 1.250000e-01 : f32
      %142 = vector.broadcast %cst_88 : f32 to vector<1x4xf32>
      %143 = arith.mulf %139, %142 : vector<1x4xf32>
      %144 = arith.mulf %141, %141 : vector<1x4xf32>
      %145 = arith.subf %143, %144 : vector<1x4xf32>
      %cst_89 = arith.constant 0.000000e+00 : f32
      %146 = vector.broadcast %cst_89 : f32 to vector<1x4xf32>
      %147 = arith.maximumf %145, %146 : vector<1x4xf32>
      %cst_90 = arith.constant 9.99999974E-6 : f32
      %148 = vector.broadcast %cst_90 : f32 to vector<1x4xf32>
      %149 = arith.addf %147, %148 : vector<1x4xf32>
      %150 = math.rsqrt %149 : vector<1x4xf32>
      %151 = tpu.transpose %135, [1, 0] : vector<16x4xf32> -> vector<4x16xf32>
      %cst_91 = arith.constant dense<0.000000e+00> : vector<1x16xf32>
      %152 = tpu.matmul %141, %151, %cst_91 {dimension_numbers = #tpu.dot_dimension_numbers<[1], [0], [0], [1], [0, 0, 1, 1], [], []>} : vector<1x4xf32>, vector<4x16xf32>, vector<1x16xf32> -> vector<1x16xf32>
      %c0_92 = arith.constant 0 : index
      %c0_93 = arith.constant 0 : index
      %153 = vector.load %arg8[%c0_92, %c0_93] : memref<1x16xf32, #tpu.memory_space<vmem>>, vector<1x16xf32>
      tpu.vector_store %arg8[%c0_92, %c0_93], %152 {strides = array<i32>} : memref<1x16xf32, #tpu.memory_space<vmem>>, vector<1x16xf32>,
      %cst_94 = arith.constant dense<0.000000e+00> : vector<1x16xf32>
      %154 = tpu.matmul %150, %151, %cst_94 {dimension_numbers = #tpu.dot_dimension_numbers<[1], [0], [0], [1], [0, 0, 1, 1], [], []>} : vector<1x4xf32>, vector<4x16xf32>, vector<1x16xf32> -> vector<1x16xf32>
      %c0_95 = arith.constant 0 : index
      %c0_96 = arith.constant 0 : index
      %155 = vector.load %arg9[%c0_95, %c0_96] : memref<1x16xf32, #tpu.memory_space<vmem>>, vector<1x16xf32>
      tpu.vector_store %arg9[%c0_95, %c0_96], %154 {strides = array<i32>} : memref<1x16xf32, #tpu.memory_space<vmem>>, vector<1x16xf32>,
    } else {
    }
    %c1_i32_78 = arith.constant 1 : i32
    %121 = arith.cmpi eq, %arg0, %c1_i32_78 : i32
    %122 = arith.extui %121 : i1 to i32
    %c0_i32_79 = arith.constant 0 : i32
    %123 = arith.cmpi ne, %122, %c0_i32_79 : i32
    scf.if %123 {
      %c0_80 = arith.constant 0 : index
      %c0_81 = arith.constant 0 : index
      %124 = vector.load %arg8[%c0_80, %c0_81] : memref<1x16xf32, #tpu.memory_space<vmem>>, vector<1x16xf32>
      %125 = vector.broadcast %124 : vector<1x16xf32> to vector<2x16xf32>
      %126 = arith.subf %107, %125 : vector<2x16xf32>
      %c0_82 = arith.constant 0 : index
      %c0_83 = arith.constant 0 : index
      %127 = vector.load %arg9[%c0_82, %c0_83] : memref<1x16xf32, #tpu.memory_space<vmem>>, vector<1x16xf32>
      %128 = vector.broadcast %127 : vector<1x16xf32> to vector<2x16xf32>
      %129 = arith.mulf %126, %128 : vector<2x16xf32>
      %130 = arith.truncf %129 : vector<2x16xf32> to vector<2x16xbf16>
      %c0_84 = arith.constant 0 : index
      %c0_85 = arith.constant 0 : index
      %131 = vector.load %arg3[%c0_84, %c0_85] : memref<16x128xbf16, #tpu.memory_space<vmem>>, vector<16x128xbf16>
      %cst = arith.constant dense<0.000000e+00> : vector<2x128xf32>
      %132 = tpu.matmul %130, %131, %cst {dimension_numbers = #tpu.dot_dimension_numbers<[1], [0], [0], [1], [0, 0, 1, 1], [], []>} : vector<2x16xbf16>, vector<16x128xbf16>, vector<2x128xf32> -> vector<2x128xf32>
      %c0_86 = arith.constant 0 : index
      %c0_87 = arith.constant 0 : index
      %133 = vector.load %arg4[%c0_86, %c0_87] : memref<1x128xf32, #tpu.memory_space<vmem>>, vector<1x128xf32>
      %134 = vector.broadcast %133 : vector<1x128xf32> to vector<2x128xf32>
      %135 = arith.addf %132, %134 : vector<2x128xf32>
      %c0_88 = arith.constant 0 : index
      %c0_89 = arith.constant 0 : index
      %136 = vector.load %arg5[%c0_88, %c0_89] : memref<2x128xf32, #tpu.memory_space<vmem>>, vector<2x128xf32>
      tpu.vector_store %arg5[%c0_88, %c0_89], %135 {strides = array<i32>} : memref<2x128xf32, #tpu.memory_space<vmem>>, vector<2x128xf32>,
    } else {
    }
    return
  }
  func.func @transform_0(%arg0: i32, %arg1: i32) -> (i32, i32, i32) {
    %c0_i32 = arith.constant 0 : i32
    %c0_i32_0 = arith.constant 0 : i32
    %c0_i32_1 = arith.constant 0 : i32
    return %c0_i32, %arg1, %c0_i32_0 : i32, i32, i32
  }
  func.func @transform_1(%arg0: i32, %arg1: i32) -> (i32, i32) {
    %c0_i32 = arith.constant 0 : i32
    %c0_i32_0 = arith.constant 0 : i32
    %c0_i32_1 = arith.constant 0 : i32
    return %c0_i32, %c0_i32_0 : i32, i32
  }
  func.func @transform_2(%arg0: i32, %arg1: i32) -> (i32, i32) {
    %c0_i32 = arith.constant 0 : i32
    %c0_i32_0 = arith.constant 0 : i32
    %c0_i32_1 = arith.constant 0 : i32
    return %c0_i32, %c0_i32_0 : i32, i32
  }
  func.func @transform_3(%arg0: i32, %arg1: i32) -> (i32, i32) {
    %0 = arith.muli %arg0, %arg1 : i32
    %c0_i32 = arith.constant 0 : i32
    %c0_i32_0 = arith.constant 0 : i32
    return %0, %c0_i32 : i32, i32
  }
}

</mosaic_0001>

<llo_original>
// kernel: probe_forward_pallas.1
$region0: #{probe_forward_pallas.1}
  #allocation0 [shape = 'u32[]', space=smem, size = 0x4, offset = 0x4, fixed_abs, tag = 'smem constant byte address 0x4 - core index']
  #allocation1 [shape = 'u32[72,128]{1,0:T(1,128)}', space=vmem, size = 0x9000, scoped, tag = 'internal scratch']
  #allocation2 [shape = 'f32[1,16]{1,0:T(1,128)}', space=vmem, size = 0x200, scoped, tag = 'scratch operand']
  #allocation3 [shape = 'f32[1,16]{1,0:T(1,128)}', space=vmem, size = 0x200, scoped, tag = 'scratch operand']
  #allocation4 [shape = 'f32[1,16]{1,0:T(1,128)}', space=vmem, size = 0x200, scoped, tag = 'scratch operand']
  #allocation5 [shape = 'f32[1,16]{1,0:T(1,128)}', space=vmem, size = 0x200, scoped, tag = 'scratch operand']
  %s0 = inlined_call_operand.vmem [shape: bf16[36,2,16], index: 0, kind: input, shape index: {}]
  %s1 = inlined_call_operand.vmem [shape: bf16[16,128], index: 1, kind: input, shape index: {}]
  %s2 = inlined_call_operand.vmem [shape: f32[1,128], index: 2, kind: input, shape index: {}]
  %s3 = inlined_call_operand.hbm [shape: f32[2,128], index: 3, kind: output, shape index: {}]
  %s4 = sld [smem:[#allocation0]]
  $region61: #{probe_forward_pallas.1} parent=0
    _
  %s6 = ssub.s32 1, %s4
  %s7 = scalar_select 0, %s6, %s4
  $region1: #{probe_forward_pallas.1} parent=0
    #allocation6 [shape = 'u8[2048]{0}', space=vmem, size = 0x800, scoped, tag = 'output window, operand 0']
    #allocation7 [shape = 's32[2]{0}', space=sflag, size = 0x8, scoped, tag = 'scoped memory for probe_forward_pallas.1']
    %8 = vsyncpa [#allocation7], 0
    %s9 = scalar_lea.sflag [#allocation7], 1
    %10 = vsyncpa %s9, 0
    loop: start=0, step=1, limit=4
    $region2: #{probe_forward_pallas.1} parent=1 // loop_pre_header
      _
    $region3: #{probe_forward_pallas.1} parent=1 // loop_header
      %s12 = sphi 0, %s16
      %p13 = scmp.ge.s32.totalorder %s12, 4
      %s19 = sphi 0, %s31
      %s20 = sphi 0, %s27
      %s21 = sphi 0, %s19
      %s22 = sphi 0, %s20
      %s23 = sphi 0, %s21
      %s24 = sphi 0, %s22
      %s34 = sphi 0, %s36
      %s37 = sphi 0, %s34
      %s38 = sphi 0, %s37
      %s54 = sphi 0, %s38
      %s58 = sphi 0, %s58
      %s60 = sphi 0, %s58
      %s61 = sphi 0, %s60
      %s75 = sphi 0, %s61
      %s79 = sphi 0, %s79
      %s81 = sphi 0, %s79
      %s82 = sphi 0, %s81
      %s96 = sphi 0, %s82
      %s104 = sphi 0, %s106
      %s107 = sphi 0, %s104
      %s108 = sphi 0, %s107
      %s124 = sphi 0, %s108
    $region4: #{probe_forward_pallas.1} parent=1 // loop_header_branch
      %15 = sbr.rel (%p13) target = $region8
    $region5: #{probe_forward_pallas.1} parent=1 // loop_body
      %s17 = ssub.s32 %s12, 1
      %s18 = ssub.s32 %s12, 2
      %s25 = sadd.s32 1, %s20
      %p26 = scmp.ge.s32.totalorder %s25, 1
      %s27 = scalar_select %p26, 0, %s25
      %s28 = sadd.s32 1, %s19
      %s29 = scalar_select %p26, %s28, %s19
      %p30 = scmp.ge.s32.totalorder %s29, 2
      %s31 = scalar_select %p30, 0, %s29
      %s32 = ssub.s32 %s20, %s27
      %p33 = scmp.eq.s32.totalorder %s32, 0
      %s35 = sadd.s32 %s34, 1
      %s36 = scalar_select %p33, %s34, %s35
      %p39 = pneg %p33
      %p40 = scmp.eq.s32.totalorder %s12, 1
      %p41 = por %p39, %p40
      %p42 = scmp.ne.s32.totalorder %s34, %s37
      %p43 = scmp.eq.s32.totalorder %s12, 0
      %p44 = por %p42, %p43
      %p45 = scmp.ne.s32.totalorder %s34, %s37
      %p46 = scmp.eq.s32.totalorder %s17, 1
      %p47 = por %p45, %p46
      %p48 = scmp.ne.s32.totalorder %s37, %s38
      %p49 = scmp.eq.s32.totalorder %s17, 0
      %p50 = por %p48, %p49
      %p51 = scmp.ne.s32.totalorder %s37, %s38
      %p52 = scmp.eq.s32.totalorder %s18, 1
      %p53 = por %p51, %p52
      %p55 = scmp.ne.s32.totalorder %s38, %s54
      %p56 = scmp.eq.s32.totalorder %s18, 0
      %p57 = por %p55, %p56
      %s59 = sadd.s32 %s58, 1
      %p62 = scmp.eq.s32.totalorder %s12, 1
      %p63 = scmp.ne.s32.totalorder %s58, %s60
      %p64 = scmp.eq.s32.totalorder %s12, 0
      %p65 = por %p63, %p64
      %p66 = scmp.ne.s32.totalorder %s58, %s60
      %p67 = scmp.eq.s32.totalorder %s17, 1
      %p68 = por %p66, %p67
      %p69 = scmp.ne.s32.totalorder %s60, %s61
      %p70 = scmp.eq.s32.totalorder %s17, 0
      %p71 = por %p69, %p70
      %p72 = scmp.ne.s32.totalorder %s60, %s61
      %p73 = scmp.eq.s32.totalorder %s18, 1
      %p74 = por %p72, %p73
      %p76 = scmp.ne.s32.totalorder %s61, %s75
      %p77 = scmp.eq.s32.totalorder %s18, 0
      %p78 = por %p76, %p77
      %s80 = sadd.s32 %s79, 1
      %p83 = scmp.eq.s32.totalorder %s12, 1
      %p84 = scmp.ne.s32.totalorder %s79, %s81
      %p85 = scmp.eq.s32.totalorder %s12, 0
      %p86 = por %p84, %p85
      %p87 = scmp.ne.s32.totalorder %s79, %s81
      %p88 = scmp.eq.s32.totalorder %s17, 1
      %p89 = por %p87, %p88
      %p90 = scmp.ne.s32.totalorder %s81, %s82
      %p91 = scmp.eq.s32.totalorder %s17, 0
      %p92 = por %p90, %p91
      %p93 = scmp.ne.s32.totalorder %s81, %s82
      %p94 = scmp.eq.s32.totalorder %s18, 1
      %p95 = por %p93, %p94
      %p97 = scmp.ne.s32.totalorder %s82, %s96
      %p98 = scmp.eq.s32.totalorder %s18, 0
      %p99 = por %p97, %p98
      %s100 = smul.u32 %s19, %s20
      %s101 = smul.u32 %s31, %s27
      %s102 = ssub.s32 %s100, %s101
      %p103 = scmp.eq.s32.totalorder %s102, 0
      %s105 = sadd.s32 %s104, 1
      %s106 = scalar_select %p103, %s104, %s105
      %p109 = pneg %p103
      %p110 = scmp.eq.s32.totalorder %s12, 1
      %p111 = por %p109, %p110
      %p112 = scmp.ne.s32.totalorder %s104, %s107
      %p113 = scmp.eq.s32.totalorder %s12, 0
      %p114 = por %p112, %p113
      %p115 = scmp.ne.s32.totalorder %s104, %s107
      %p116 = scmp.eq.s32.totalorder %s17, 1
      %p117 = por %p115, %p116
      %p118 = scmp.ne.s32.totalorder %s107, %s108
      %p119 = scmp.eq.s32.totalorder %s17, 0
      %p120 = por %p118, %p119
      %p121 = scmp.ne.s32.totalorder %s107, %s108
      %p122 = scmp.eq.s32.totalorder %s18, 1
      %p123 = por %p121, %p122
      %p125 = scmp.ne.s32.totalorder %s108, %s124
      %p126 = scmp.eq.s32.totalorder %s18, 0
      %p127 = por %p125, %p126
      %p128 = scmp.le.s32.totalorder 1, %s12
      %p129 = scmp.lt.s32.totalorder %s12, 3
      %p130 = pnand %p128, %p129
      %p131 = pneg %p130
      // Predicated region
      $region9: #{probe_forward_pallas.1} parent=5 // pred_check
        _
      $region10: #{probe_forward_pallas.1} parent=5 // pred_check_branch
        %133 = sbr.rel (%p130) target = $region12
      $region11: #{probe_forward_pallas.1} parent=5 // pred_region
        %s134 = ssub.s32 %s12, 1
        // Predicated region
        $region13: #{probe_forward_pallas.1} parent=11 // pred_check
          %p135 = pneg %p50
        $region14: #{probe_forward_pallas.1} parent=11 // pred_check_branch
          %137 = sbr.rel (%p135) target = $region16
        $region15: #{probe_forward_pallas.1} parent=11 // pred_region
          %p138 = scmp.lt.s32.totalorder %s22, 0
          %s139 = scalar_select %p138, %s22, 0
          %s140 = scalar_lea.vmem %s0, %s139
        $region16: #{probe_forward_pallas.1} parent=11 // pred_fallthru
          _
        // Predicated region
        $region17: #{probe_forward_pallas.1} parent=11 // pred_check
          %p141 = pneg %p71
        $region18: #{probe_forward_pallas.1} parent=11 // pred_check_branch
          %143 = sbr.rel (%p141) target = $region20
        $region19: #{probe_forward_pallas.1} parent=11 // pred_region
          _
        $region20: #{probe_forward_pallas.1} parent=11 // pred_fallthru
          _
        // Predicated region
        $region21: #{probe_forward_pallas.1} parent=11 // pred_check
          %p144 = pneg %p92
        $region22: #{probe_forward_pallas.1} parent=11 // pred_check_branch
          %146 = sbr.rel (%p144) target = $region24
        $region23: #{probe_forward_pallas.1} parent=11 // pred_region
          _
        $region24: #{probe_forward_pallas.1} parent=11 // pred_fallthru
          _
      $region12: #{probe_forward_pallas.1} parent=5 // pred_fallthru
        _
      %p147 = scmp.lt.s32.totalorder %s12, 2
      // Predicated region
      $region25: #{probe_forward_pallas.1} parent=5 // pred_check
        %p148 = pneg %p147
      $region26: #{probe_forward_pallas.1} parent=5 // pred_check_branch
        %150 = sbr.rel (%p148) target = $region28
      $region27: #{probe_forward_pallas.1} parent=5 // pred_region
        _
      $region28: #{probe_forward_pallas.1} parent=5 // pred_fallthru
        _
      %p151 = scmp.le.s32.totalorder 1, %s12
      %p152 = scmp.lt.s32.totalorder %s12, 3
      %p153 = pnand %p151, %p152
      %p154 = pneg %p153
      // Predicated region
      $region29: #{probe_forward_pallas.1} parent=5 // pred_check
        _
      $region30: #{probe_forward_pallas.1} parent=5 // pred_check_branch
        %156 = sbr.rel (%p153) target = $region32
      $region31: #{probe_forward_pallas.1} parent=5 // pred_region
        %s157 = ssub.s32 %s12, 1
        %p158 = scmp.lt.s32.totalorder %s22, 0
        %s159 = scalar_select %p158, %s22, 0
        %s160 = scalar_lea.vmem %s0, %s159
        %p161 = pneg %p50
        %p162 = pneg %p47
        %p163 = pneg %p71
        %p164 = pneg %p68
        %p165 = pneg %p92
        %p166 = pneg %p89
        %p167 = pneg %p120
        %p168 = pneg %p117
        %s169 = sand.u32 %s107, 1
        %s170 = scalar_lea.sflag [#allocation7], %s169
        %s171 = sand.u32 %s107, 1
        %s172 = smul.addr %s171, 2
        %s173 = scalar_lea.vmem [#allocation6], %s172
        %p174 = scmp.lt.s32.totalorder %s22, 0
        %s175 = scalar_select %p174, %s22, 0
        %s176 = scalar_lea.vmem %s0, %s175
        %s177 = smul.u32 %s21, %s22
        %v179 = vld [vmem:[%s176] sm:$0x1]
        %s180 = scalar_lea.vmem %s176, 1
        %v181 = vld [vmem:[%s180] sm:$0x1]
        %s182 = scalar_lea.vmem %s176, 2
        %v183 = vld [vmem:[%s182] sm:$0x1]
        %s184 = scalar_lea.vmem %s176, 3
        %v185 = vld [vmem:[%s184] sm:$0x1]
        %s186 = scalar_lea.vmem %s176, 4
        %v187 = vld [vmem:[%s186] sm:$0x1]
        %v188 = vunpack.c.l.bf16 %v179
        %v189 = vunpack.c.l.bf16 %v187
        %v190 = vmax.f32 %v188, %v189
        %v191 = vpack.c.bf16 %v190, %v190
        %s192 = scalar_lea.vmem %s176, 5
        %v193 = vld [vmem:[%s192] sm:$0x1]
        %v194 = vunpack.c.l.bf16 %v181
        %v195 = vunpack.c.l.bf16 %v193
        %v196 = vmax.f32 %v194, %v195
        %v197 = vpack.c.bf16 %v196, %v196
        %s198 = scalar_lea.vmem %s176, 6
        %v199 = vld [vmem:[%s198] sm:$0x1]
        %v200 = vunpack.c.l.bf16 %v183
        %v201 = vunpack.c.l.bf16 %v199
        %v202 = vmax.f32 %v200, %v201
        %v203 = vpack.c.bf16 %v202, %v202
        %s204 = scalar_lea.vmem %s176, 7
        %v205 = vld [vmem:[%s204] sm:$0x1]
        %v206 = vunpack.c.l.bf16 %v185
        %v207 = vunpack.c.l.bf16 %v205
        %v208 = vmax.f32 %v206, %v207
        %v209 = vpack.c.bf16 %v208, %v208
        %s210 = scalar_lea.vmem %s176, 8
        %v211 = vld [vmem:[%s210] sm:$0x1]
        %v212 = vunpack.c.l.bf16 %v191
        %v213 = vunpack.c.l.bf16 %v211
        %v214 = vmax.f32 %v212, %v213
        %v215 = vpack.c.bf16 %v214, %v214
        %s216 = scalar_lea.vmem %s176, 9
        %v217 = vld [vmem:[%s216] sm:$0x1]
        %v218 = vunpack.c.l.bf16 %v197
        %v219 = vunpack.c.l.bf16 %v217
        %v220 = vmax.f32 %v218, %v219
        %v221 = vpack.c.bf16 %v220, %v220
        %s222 = scalar_lea.vmem %s176, 10
        %v223 = vld [vmem:[%s222] sm:$0x1]
        %v224 = vunpack.c.l.bf16 %v203
        %v225 = vunpack.c.l.bf16 %v223
        %v226 = vmax.f32 %v224, %v225
        %v227 = vpack.c.bf16 %v226, %v226
        %s228 = scalar_lea.vmem %s176, 11
        %v229 = vld [vmem:[%s228] sm:$0x1]
        %v230 = vunpack.c.l.bf16 %v209
        %v231 = vunpack.c.l.bf16 %v229
        %v232 = vmax.f32 %v230, %v231
        %v233 = vpack.c.bf16 %v232, %v232
        %s234 = scalar_lea.vmem %s176, 12
        %v235 = vld [vmem:[%s234] sm:$0x1]
        %v236 = vunpack.c.l.bf16 %v215
        %v237 = vunpack.c.l.bf16 %v235
        %v238 = vmax.f32 %v236, %v237
        %v239 = vpack.c.bf16 %v238, %v238
        %s240 = scalar_lea.vmem %s176, 13
        %v241 = vld [vmem:[%s240] sm:$0x1]
        %v242 = vunpack.c.l.bf16 %v221
        %v243 = vunpack.c.l.bf16 %v241
        %v244 = vmax.f32 %v242, %v243
        %v245 = vpack.c.bf16 %v244, %v244
        %s246 = scalar_lea.vmem %s176, 14
        %v247 = vld [vmem:[%s246] sm:$0x1]
        %v248 = vunpack.c.l.bf16 %v227
        %v249 = vunpack.c.l.bf16 %v247
        %v250 = vmax.f32 %v248, %v249
        %v251 = vpack.c.bf16 %v250, %v250
        %s252 = scalar_lea.vmem %s176, 15
        %v253 = vld [vmem:[%s252] sm:$0x1]
        %v254 = vunpack.c.l.bf16 %v233
        %v255 = vunpack.c.l.bf16 %v253
        %v256 = vmax.f32 %v254, %v255
        %v257 = vpack.c.bf16 %v256, %v256
        %s258 = scalar_lea.vmem %s176, 16
        %v259 = vld [vmem:[%s258] sm:$0x1]
        %v260 = vunpack.c.l.bf16 %v239
        %v261 = vunpack.c.l.bf16 %v259
        %v262 = vmax.f32 %v260, %v261
        %v263 = vpack.c.bf16 %v262, %v262
        %s264 = scalar_lea.vmem %s176, 17
        %v265 = vld [vmem:[%s264] sm:$0x1]
        %v266 = vunpack.c.l.bf16 %v245
        %v267 = vunpack.c.l.bf16 %v265
        %v268 = vmax.f32 %v266, %v267
        %v269 = vpack.c.bf16 %v268, %v268
        %s270 = scalar_lea.vmem %s176, 18
        %v271 = vld [vmem:[%s270] sm:$0x1]
        %v272 = vunpack.c.l.bf16 %v251
        %v273 = vunpack.c.l.bf16 %v271
        %v274 = vmax.f32 %v272, %v273
        %v275 = vpack.c.bf16 %v274, %v274
        %s276 = scalar_lea.vmem %s176, 19
        %v277 = vld [vmem:[%s276] sm:$0x1]
        %v278 = vunpack.c.l.bf16 %v257
        %v279 = vunpack.c.l.bf16 %v277
        %v280 = vmax.f32 %v278, %v279
        %v281 = vpack.c.bf16 %v280, %v280
        %s282 = scalar_lea.vmem %s176, 20
        %v283 = vld [vmem:[%s282] sm:$0x1]
        %v284 = vunpack.c.l.bf16 %v263
        %v285 = vunpack.c.l.bf16 %v283
        %v286 = vmax.f32 %v284, %v285
        %v287 = vpack.c.bf16 %v286, %v286
        %s288 = scalar_lea.vmem %s176, 21
        %v289 = vld [vmem:[%s288] sm:$0x1]
        %v290 = vunpack.c.l.bf16 %v269
        %v291 = vunpack.c.l.bf16 %v289
        %v292 = vmax.f32 %v290, %v291
        %v293 = vpack.c.bf16 %v292, %v292
        %s294 = scalar_lea.vmem %s176, 22
        %v295 = vld [vmem:[%s294] sm:$0x1]
        %v296 = vunpack.c.l.bf16 %v275
        %v297 = vunpack.c.l.bf16 %v295
        %v298 = vmax.f32 %v296, %v297
        %v299 = vpack.c.bf16 %v298, %v298
        %s300 = scalar_lea.vmem %s176, 23
        %v301 = vld [vmem:[%s300] sm:$0x1]
        %v302 = vunpack.c.l.bf16 %v281
        %v303 = vunpack.c.l.bf16 %v301
        %v304 = vmax.f32 %v302, %v303
        %v305 = vpack.c.bf16 %v304, %v304
        %s306 = scalar_lea.vmem %s176, 24
        %v307 = vld [vmem:[%s306] sm:$0x1]
        %v308 = vunpack.c.l.bf16 %v287
        %v309 = vunpack.c.l.bf16 %v307
        %v310 = vmax.f32 %v308, %v309
        %v311 = vpack.c.bf16 %v310, %v310
        %s312 = scalar_lea.vmem %s176, 25
        %v313 = vld [vmem:[%s312] sm:$0x1]
        %v314 = vunpack.c.l.bf16 %v293
        %v315 = vunpack.c.l.bf16 %v313
        %v316 = vmax.f32 %v314, %v315
        %v317 = vpack.c.bf16 %v316, %v316
        %s318 = scalar_lea.vmem %s176, 26
        %v319 = vld [vmem:[%s318] sm:$0x1]
        %v320 = vunpack.c.l.bf16 %v299
        %v321 = vunpack.c.l.bf16 %v319
        %v322 = vmax.f32 %v320, %v321
        %v323 = vpack.c.bf16 %v322, %v322
        %s324 = scalar_lea.vmem %s176, 27
        %v325 = vld [vmem:[%s324] sm:$0x1]
        %v326 = vunpack.c.l.bf16 %v305
        %v327 = vunpack.c.l.bf16 %v325
        %v328 = vmax.f32 %v326, %v327
        %v329 = vpack.c.bf16 %v328, %v328
        %s330 = scalar_lea.vmem %s176, 28
        %v331 = vld [vmem:[%s330] sm:$0x1]
        %v332 = vunpack.c.l.bf16 %v311
        %v333 = vunpack.c.l.bf16 %v331
        %v334 = vmax.f32 %v332, %v333
        %v335 = vpack.c.bf16 %v334, %v334
        %s336 = scalar_lea.vmem %s176, 29
        %v337 = vld [vmem:[%s336] sm:$0x1]
        %v338 = vunpack.c.l.bf16 %v317
        %v339 = vunpack.c.l.bf16 %v337
        %v340 = vmax.f32 %v338, %v339
        %v341 = vpack.c.bf16 %v340, %v340
        %s342 = scalar_lea.vmem %s176, 30
        %v343 = vld [vmem:[%s342] sm:$0x1]
        %v344 = vunpack.c.l.bf16 %v323
        %v345 = vunpack.c.l.bf16 %v343
        %v346 = vmax.f32 %v344, %v345
        %v347 = vpack.c.bf16 %v346, %v346
        %s348 = scalar_lea.vmem %s176, 31
        %v349 = vld [vmem:[%s348] sm:$0x1]
        %v350 = vunpack.c.l.bf16 %v329
        %v351 = vunpack.c.l.bf16 %v349
        %v352 = vmax.f32 %v350, %v351
        %v353 = vpack.c.bf16 %v352, %v352
        %s354 = scalar_lea.vmem %s176, 32
        %v355 = vld [vmem:[%s354] sm:$0x1]
        %v356 = vunpack.c.l.bf16 %v335
        %v357 = vunpack.c.l.bf16 %v355
        %v358 = vmax.f32 %v356, %v357
        %v359 = vpack.c.bf16 %v358, %v358
        %s360 = scalar_lea.vmem %s176, 33
        %v361 = vld [vmem:[%s360] sm:$0x1]
        %v362 = vunpack.c.l.bf16 %v341
        %v363 = vunpack.c.l.bf16 %v361
        %v364 = vmax.f32 %v362, %v363
        %v365 = vpack.c.bf16 %v364, %v364
        %s366 = scalar_lea.vmem %s176, 34
        %v367 = vld [vmem:[%s366] sm:$0x1]
        %v368 = vunpack.c.l.bf16 %v347
        %v369 = vunpack.c.l.bf16 %v367
        %v370 = vmax.f32 %v368, %v369
        %v371 = vpack.c.bf16 %v370, %v370
        %s372 = scalar_lea.vmem %s176, 35
        %v373 = vld [vmem:[%s372] sm:$0x1]
        %v374 = vunpack.c.l.bf16 %v353
        %v375 = vunpack.c.l.bf16 %v373
        %v376 = vmax.f32 %v374, %v375
        %v377 = vpack.c.bf16 %v376, %v376
        %v378 = vunpack.c.l.bf16 %v359
        %v379 = vunpack.c.l.bf16 %v365
        %v380 = vmax.f32 %v378, %v379
        %v381 = vpack.c.bf16 %v380, %v380
        %v382 = vunpack.c.l.bf16 %v381
        %v383 = vunpack.c.l.bf16 %v371
        %v384 = vmax.f32 %v382, %v383
        %v385 = vpack.c.bf16 %v384, %v384
        %v386 = vunpack.c.l.bf16 %v385
        %v387 = vunpack.c.l.bf16 %v377
        %v388 = vmax.f32 %v386, %v387
        %v389 = vpack.c.bf16 %v388, %v388
        %v390 = vunpack.c.l.bf16 %v389
        %p391 = scmp.eq.s32.totalorder %s21, 0
        %p392 = scmp.eq.s32.totalorder %s22, 0
        %p393 = pnand %p391, %p392
        %p394 = pneg %p393
        // Predicated region
        $region33: #{probe_forward_pallas.1} parent=31 // pred_check
          _
        $region34: #{probe_forward_pallas.1} parent=31 // pred_check_branch
          %396 = sbr.rel (%p393) target = $region36
        $region35: #{probe_forward_pallas.1} parent=31 // pred_region
          %vm397 = vcmask 122880
          %398 = vst.msk [vmem:[#allocation2] sm:$0x1] %vm397, 0.0
          %399 = vst.msk [vmem:[#allocation3] sm:$0x1] %vm397, 0.0
        $region36: #{probe_forward_pallas.1} parent=31 // pred_fallthru
          _
        // Predicated region
        $region37: #{probe_forward_pallas.1} parent=31 // pred_check
          %p400 = pneg %p391
        $region38: #{probe_forward_pallas.1} parent=31 // pred_check_branch
          %402 = sbr.rel (%p400) target = $region40
        $region39: #{probe_forward_pallas.1} parent=31 // pred_region
          %v403 = vld [vmem:[#allocation2] sm:$0x1]
          %vm404 = vcmask 123904
          %v405 = vsel %vm404, %v390, 0.0
          %v406 = vrot.slane %v405, 4
          %v407 = vadd.f32 %v405, %v406
          %v408 = vrot.slane %v407, 2
          %v409 = vadd.f32 %v407, %v408
          %v410 = vrot.slane %v409, 1
          %v411 = vadd.f32 %v409, %v410
          %v412 = vadd.f32 %v403, %v411
          %vm413 = vcmask 122880
          %414 = vst.msk [vmem:[#allocation2] sm:$0x1] %vm413, %v412
          %v415 = vld [vmem:[#allocation3] sm:$0x1]
          %v416 = vmul.f32 %v390, %v390
          %v417 = vsel %vm404, %v416, 0.0
          %v418 = vrot.slane %v417, 4
          %v419 = vadd.f32 %v417, %v418
          %v420 = vrot.slane %v419, 2
          %v421 = vadd.f32 %v419, %v420
          %v422 = vrot.slane %v421, 1
          %v423 = vadd.f32 %v421, %v422
          %v424 = vadd.f32 %v415, %v423
          %425 = vst.msk [vmem:[#allocation3] sm:$0x1] %vm413, %v424
        $region40: #{probe_forward_pallas.1} parent=31 // pred_fallthru
          _
        %p426 = scmp.eq.s32.totalorder %s21, 1
        %p427 = pnand %p426, %p392
        %p428 = pneg %p427
        // Predicated region
        $region41: #{probe_forward_pallas.1} parent=31 // pred_check
          _
        $region42: #{probe_forward_pallas.1} parent=31 // pred_check_branch
          %430 = sbr.rel (%p427) target = $region44
        $region43: #{probe_forward_pallas.1} parent=31 // pred_region
          %v431 = vlaneseq
          %v432 = vshrl.u32 %v431, 7
          %v433 = vadd.s32 %v432, 8
          %v434 = vlaneseq
          %v435 = vand.u32 %v434, 127
          %v436 = vmul.u32 %v435, 4
          %v437 = vsub.s32 %v432, %v436
          %v438 = vsub.s32 %v433, %v436
          %vm439 = vcmp.ge.s32.totalorder %v437, 0
          %vm440 = vcmp.ge.s32.totalorder %v438, 0
          %vm441 = vcmp.lt.s32.totalorder %v437, 4
          %vm442 = vcmp.lt.s32.totalorder %v438, 4
          %vm443 = vmand %vm439, %vm441
          %vm444 = vmand %vm440, %vm442
          %v445 = vsel %vm443, 1, 0
          %v446 = vsel %vm444, 1, 0
          %v447 = vcvt.s32.f32 %v445
          %v448 = vcvt.s32.f32 %v446
          %v449 = vld [vmem:[#allocation2] sm:$0x1]
          %vm450 = vcmask 130048
          %v452 = vsel %vm450, %v449, 0
          %454 = vmatpush.msra.mxu0 0.0
          %455 = vmatpush.msra.mxu0 0.0
          %456 = vmatpush.msra.mxu0 0.0
          %457 = vmatpush.msra.mxu0 0.0
          %458 = vmatpush.msra.mxu0 0.0
          %459 = vmatpush.msra.mxu0 0.0
          %460 = vmatpush.msra.mxu0 0.0
          %461 = vmatpush.msra.mxu0 0.0
          %462 = vmatpush.msra.mxu0 0.0
          %463 = vmatpush.msra.mxu0 0.0
          %464 = vmatpush.msra.mxu0 0.0
          %465 = vmatpush.msra.mxu0 0.0
          %466 = vmatpush.msra.mxu0 0.0
          %467 = vmatpush.msra.mxu0 0.0
          %468 = vmatpush.msra.mxu0 %v448
          %469 = vmatpush.msra.mxu0 %v447
          %470 = vmatmul.f32.gmra.mxu0 %v452
          %v471 = vpop.f32.mrf.mxu0
          %v472 = vadd.f32 0.0, %v471
          %473 = vdwg.mxu0
          %v474 = vld [vmem:[#allocation3] sm:$0x1]
          %v476 = vsel %vm450, %v474, 0
          %478 = vmatpush.msra.mxu0 0.0
          %479 = vmatpush.msra.mxu0 0.0
          %480 = vmatpush.msra.mxu0 0.0
          %481 = vmatpush.msra.mxu0 0.0
          %482 = vmatpush.msra.mxu0 0.0
          %483 = vmatpush.msra.mxu0 0.0
          %484 = vmatpush.msra.mxu0 0.0
          %485 = vmatpush.msra.mxu0 0.0
          %486 = vmatpush.msra.mxu0 0.0
          %487 = vmatpush.msra.mxu0 0.0
          %488 = vmatpush.msra.mxu0 0.0
          %489 = vmatpush.msra.mxu0 0.0
          %490 = vmatpush.msra.mxu0 0.0
          %491 = vmatpush.msra.mxu0 0.0
          %492 = vmatpush.msra.mxu0 %v448
          %493 = vmatpush.msra.mxu0 %v447
          %494 = vmatmul.f32.gmra.mxu0 %v476
          %v495 = vpop.f32.mrf.mxu0
          %v496 = vadd.f32 0.0, %v495
          %497 = vdwg.mxu0
          %v498 = vmul.f32 %v472, 0.125
          %v499 = vmul.f32 %v496, 0.125
          %v500 = vmul.f32 %v498, %v498
          %v501 = vsub.f32 %v499, %v500
          %v502 = vmax.f32 %v501, 0.0
          %v503 = vadd.f32 %v502, 1e-05
          %v504 = vrsqrt.pop %v503
          %v505 = vmul.f32 %v504, %v503
          %v506 = vmul.f32 %v505, %v504
          %v507 = vmul.f32 0.5, %v506
          %v508 = vsub.f32 1.5, %v507
          %v509 = vmul.f32 %v504, %v508
          %vm510 = vweird.f32 %v503
          %vm511 = vweird.f32 %v504
          %vm512 = vmor %vm510, %vm511
          %v513 = vsel %vm512, %v504, %v509
          %vm514 = vcmask 31744
          %v516 = vsel %vm514, %v498, 0
          %v519 = vsel %vm514, %v447, 0
          %v522 = vsel %vm514, %v448, 0
          %524 = vmatpush.xpose.msra.mxu0 0.0
          %525 = vmatpush.xpose.msra.mxu0 0.0
          %526 = vmatpush.xpose.msra.mxu0 0.0
          %527 = vmatpush.xpose.msra.mxu0 0.0
          %528 = vmatpush.xpose.msra.mxu0 0.0
          %529 = vmatpush.xpose.msra.mxu0 0.0
          %530 = vmatpush.xpose.msra.mxu0 0.0
          %531 = vmatpush.xpose.msra.mxu0 0.0
          %532 = vmatpush.xpose.msra.mxu0 0.0
          %533 = vmatpush.xpose.msra.mxu0 0.0
          %534 = vmatpush.xpose.msra.mxu0 0.0
          %535 = vmatpush.xpose.msra.mxu0 0.0
          %536 = vmatpush.xpose.msra.mxu0 0.0
          %537 = vmatpush.xpose.msra.mxu0 0.0
          %538 = vmatpush.xpose.msra.mxu0 %v522
          %539 = vmatpush.xpose.msra.mxu0 %v519
          %540 = vmatmul.f32.gmra.mxu0 %v516
          %v541 = vpop.f32.mrf.mxu0
          %v542 = vadd.f32 0.0, %v541
          %543 = vdwg.mxu0
          %vm544 = vcmask 122880
          %545 = vst.msk [vmem:[#allocation4] sm:$0x1] %vm544, %v542
          %v547 = vsel %vm514, %v513, 0
          %549 = vmatpush.xpose.msra.mxu0 0.0
          %550 = vmatpush.xpose.msra.mxu0 0.0
          %551 = vmatpush.xpose.msra.mxu0 0.0
          %552 = vmatpush.xpose.msra.mxu0 0.0
          %553 = vmatpush.xpose.msra.mxu0 0.0
          %554 = vmatpush.xpose.msra.mxu0 0.0
          %555 = vmatpush.xpose.msra.mxu0 0.0
          %556 = vmatpush.xpose.msra.mxu0 0.0
          %557 = vmatpush.xpose.msra.mxu0 0.0
          %558 = vmatpush.xpose.msra.mxu0 0.0
          %559 = vmatpush.xpose.msra.mxu0 0.0
          %560 = vmatpush.xpose.msra.mxu0 0.0
          %561 = vmatpush.xpose.msra.mxu0 0.0
          %562 = vmatpush.xpose.msra.mxu0 0.0
          %563 = vmatpush.xpose.msra.mxu0 %v522
          %564 = vmatpush.xpose.msra.mxu0 %v519
          %565 = vmatmul.f32.gmra.mxu0 %v547
          %v566 = vpop.f32.mrf.mxu0
          %v567 = vadd.f32 0.0, %v566
          %568 = vdwg.mxu0
          %569 = vst.msk [vmem:[#allocation5] sm:$0x1] %vm544, %v567
        $region44: #{probe_forward_pallas.1} parent=31 // pred_fallthru
          _
        // Predicated region
        $region45: #{probe_forward_pallas.1} parent=31 // pred_check
          %p570 = pneg %p426
        $region46: #{probe_forward_pallas.1} parent=31 // pred_check_branch
          %572 = sbr.rel (%p570) target = $region48
        $region47: #{probe_forward_pallas.1} parent=31 // pred_region
          %v573 = vld [vmem:[#allocation4] sm:$0x1]
          %v575 = vperm.slane %v573, 0
          %v577 = vsub.f32 %v390, %v575
          %v578 = vld [vmem:[#allocation5] sm:$0x1]
          %v580 = vperm.slane %v578, 0
          %v582 = vmul.f32 %v577, %v580
          %v583 = vpack.c.bf16 %v582, %v582
          %v584 = vld [vmem:[%s1] sm:$0xf]
          %v585 = vld [vmem:[%s1 + $0x4] sm:$0xf]
          %v586 = vld [vmem:[%s2] sm:$0x1]
          %v588 = vperm.slane %v586, 0
          %v592 = vunpack.c.l.b16 %v584
          %v593 = vunpack.c.l.b16 %v585
          %v594 = vpack.c.b16 %v593, %v592
          %vm596 = vcmask 130048
          %v598 = vsel %vm596, %v583, 0
          %600 = vmatpush.bf16.msra.mxu0 0
          %601 = vmatpush.bf16.msra.mxu0 0
          %602 = vmatpush.bf16.msra.mxu0 0
          %603 = vmatpush.bf16.msra.mxu0 0
          %604 = vmatpush.bf16.msra.mxu0 0
          %605 = vmatpush.bf16.msra.mxu0 0
          %606 = vmatpush.bf16.msra.mxu0 0
          %607 = vmatpush.bf16.msra.mxu0 %v594
          %608 = vmatmul.bf16.gmra.mxu0 %v598
          %v609 = vpop.f32.mrf.mxu0
          %v610 = vadd.f32 %v588, %v609
          %v611 = vpop.f32.mrf.mxu0
          %612 = vdwg.mxu0
          %613 = vst [vmem:[%s173] sm:$0x3] %v610
        $region48: #{probe_forward_pallas.1} parent=31 // pred_fallthru
          _
        %s614 = sand.u32 %s107, 1
        %s615 = scalar_lea.sflag [#allocation7], %s614
        %s616 = sand.u32 %s107, 1
        %s617 = smul.addr %s616, 2
        %s618 = scalar_lea.vmem [#allocation6], %s617
        // Predicated region
        $region49: #{probe_forward_pallas.1} parent=31 // pred_check
          %p619 = pneg %p117
        $region50: #{probe_forward_pallas.1} parent=31 // pred_check_branch
          %621 = sbr.rel (%p619) target = $region52
        $region51: #{probe_forward_pallas.1} parent=31 // pred_region
          %s622 = smul.u32 %s21, %s22
          %624 = vsyncadd %s615, 0
          %s625 = smul.addr %s622, 2
          %s626 = scalar_lea.hbm %s3, %s625
          %s628 = sshll.u32 %s618, 4
          %s629 = int_to_ptr.vmem [resolvable:$true] %s628
          %s630 = sshll.u32 %s626, 4
          %s631 = int_to_ptr.hbm [resolvable:$true] %s630
          %633 = dma.vmem_to_hbm [thread:$0]  %s629, 32, %s631, %s615
        $region52: #{probe_forward_pallas.1} parent=31 // pred_fallthru
          _
      $region32: #{probe_forward_pallas.1} parent=5 // pred_fallthru
        _
      %p634 = scmp.le.s32.totalorder 2, %s12
      // Predicated region
      $region53: #{probe_forward_pallas.1} parent=5 // pred_check
        %p635 = pneg %p634
      $region54: #{probe_forward_pallas.1} parent=5 // pred_check_branch
        %637 = sbr.rel (%p635) target = $region56
      $region55: #{probe_forward_pallas.1} parent=5 // pred_region
        %s638 = ssub.s32 %s12, 2
        // Predicated region
        $region57: #{probe_forward_pallas.1} parent=55 // pred_check
          %p639 = pneg %p123
        $region58: #{probe_forward_pallas.1} parent=55 // pred_check_branch
          %641 = sbr.rel (%p639) target = $region60
        $region59: #{probe_forward_pallas.1} parent=55 // pred_region
          %s642 = sand.u32 %s108, 1
          %s643 = scalar_lea.sflag [#allocation7], %s642
          %s644 = sand.u32 %s108, 1
          %s645 = smul.addr %s644, 2
          %s646 = scalar_lea.vmem [#allocation6], %s645
          %648 = dma.done %s643, 32
        $region60: #{probe_forward_pallas.1} parent=55 // pred_fallthru
          _
      $region56: #{probe_forward_pallas.1} parent=5 // pred_fallthru
        _
    $region6: #{probe_forward_pallas.1} parent=1 // loop_footer
      %s16 = sadd.s32 1, %s12
    $region7: #{probe_forward_pallas.1} parent=1 // loop_footer_branch
      %11 = sbr.rel target = $region3
    $region8: #{probe_forward_pallas.1} parent=1 // loop_exit
      _
    %649 = vsyncpa [#allocation7], 1
    %s650 = scalar_lea.sflag [#allocation7], 1
    %651 = vsyncpa %s650, 1

</llo_original>
